<compile_context>
chip_gen: v6e
topology: v6e:2x2x1
jax: 0.10.0
libtpu: 0.0.40
codegen_flags: <defaults>
</compile_context>

<pallas_src>
from functools import partial

import jax
import jax.numpy as jnp
from jax.experimental import pallas as pl
from jax.experimental.pallas import tpu as pltpu


def _copy_kernel(in_ref, out_ref):
    # Lane-trimmed path: the input block already holds only interchange_dim
    # lanes, so this is a straight VMEM copy (1 vld + 1 vst per vreg).
    out_ref[...] = in_ref[...]


def _slice_kernel(in_ref, out_ref, *, interchange_dim):
    # Fallback path: full-D input block; static lane slice -> sliced load.
    out_ref[...] = in_ref[:, :interchange_dim]


def _sublane_multiple(dtype):
    # Second-to-last block dim must be a multiple of the packed sublane count
    # (f32 -> 8, bf16 -> 16, int8 -> 32) unless it equals the full dim.
    itemsize = jnp.dtype(dtype).itemsize
    return max(8, 8 * (4 // max(itemsize, 1)))


def collect_intervention(base, interchange_dim=None):
    """JAX/Pallas equivalent of CollectIntervention.forward(base).

    base: (B, S, D) array.
    interchange_dim: static int <= D (defaults to D, i.e. embed_dim).
    Returns base[..., :interchange_dim].
    """
    B, S, D = base.shape
    if interchange_dim is None:
        interchange_dim = D
    interchange_dim = int(interchange_dim)
    assert 0 < interchange_dim <= D

    # TODO(synk): the `subspaces` / `subspace_partition` gather path (arbitrary
    # last-dim index lists) is not implemented; only the default
    # base[..., :interchange_dim] path of mode='collect' is kerneled.

    # Identity: collecting every feature is a no-op; skip the kernel entirely
    # (saves a full HBM read + write of the tensor).
    if interchange_dim == D:
        return base

    dtype = base.dtype
    itemsize = jnp.dtype(dtype).itemsize
    rows = B * S
    x = base.reshape(rows, D)  # contiguous reshape, free

    # Only DMA the lanes we keep when the trimmed width stays 128-aligned.
    lane_trim = (interchange_dim % 128 == 0)
    in_lanes = interchange_dim if lane_trim else D

    # Row-tile sizing: target up to 1024 rows/step, bounded by a conservative
    # VMEM budget for double-buffered input + output blocks.
    sub = _sublane_multiple(dtype)
    vmem_budget = 16 * 1024 * 1024                       # fits every TPU gen
    per_row = 2 * (in_lanes + interchange_dim) * itemsize  # double-buffered
    tile_rows = max(sub, min(1024, vmem_budget // per_row))
    tile_rows = (tile_rows // sub) * sub
    if rows <= tile_rows:
        tile_rows = rows  # full-extent row block is always legal
    grid = (pl.cdiv(rows, tile_rows),)

    if lane_trim:
        kernel = _copy_kernel
        in_spec = pl.BlockSpec((tile_rows, interchange_dim), lambda r: (r, 0))
    else:
        kernel = partial(_slice_kernel, interchange_dim=interchange_dim)
        in_spec = pl.BlockSpec((tile_rows, D), lambda r: (r, 0))

    out = pl.pallas_call(
        kernel,
        out_shape=jax.ShapeDtypeStruct((rows, interchange_dim), dtype),
        grid_spec=pltpu.PrefetchScalarGridSpec(
            num_scalar_prefetch=0,
            grid=grid,
            in_specs=[in_spec],
            out_specs=pl.BlockSpec(
                (tile_rows, interchange_dim), lambda r: (r, 0)
            ),
        ),
        compiler_params=pltpu.CompilerParams(
            dimension_semantics=("parallel",),
            vmem_limit_bytes=64 * 1024 * 1024,
        ),
        cost_estimate=pl.CostEstimate(
            flops=0,
            transcendentals=0,
            bytes_accessed=rows * (in_lanes + interchange_dim) * itemsize,
        ),
    )(x)
    return out.reshape(B, S, interchange_dim)


if __name__ == "__main__":
    key = jax.random.PRNGKey(0)
    k1, k2 = jax.random.split(key)

    # Case 1: small hidden, interchange_dim not a multiple of 128
    # (fallback full-D input block + static lane slice).
    B, S, D = 2, 8, 32
    interchange_dim = 16  # as if set via set_interchange_dim(16)
    base = jax.random.normal(k1, (B, S, D), dtype=jnp.float32)
    out = jax.block_until_ready(collect_intervention(base, interchange_dim))
    ref = base[..., :interchange_dim]
    assert out.shape == (B, S, interchange_dim)
    assert out.dtype == base.dtype
    assert jnp.array_equal(out, ref)

    # Case 2: interchange_dim multiple of 128 (lane-trimmed DMA path).
    B2, S2, D2, id2 = 2, 16, 256, 128
    base2 = jax.random.normal(k2, (B2, S2, D2), dtype=jnp.float32)
    out2 = jax.block_until_ready(collect_intervention(base2, id2))
    assert out2.shape == (B2, S2, id2)
    assert jnp.array_equal(out2, base2[..., :id2])

    # Case 3: interchange_dim == embed_dim default -> identity short-circuit.
    out3 = jax.block_until_ready(collect_intervention(base))
    assert jnp.array_equal(out3, base)

    print("KERNEL_OK")
</pallas_src>

<mosaic_0001>
module attributes {stable_mosaic.version = 11 : i64} {
  func.func @_slice_kernel(%arg0: i32, %arg1: memref<16x32xf32, #tpu.memory_space<vmem>>, %arg2: memref<16x16xf32, #tpu.memory_space<vmem>>) attributes {dimension_semantics = [#tpu.dimension_semantics<parallel>], iteration_bounds = array<i64: 1>, scalar_prefetch = 0 : i64, scratch_operands = 0 : i64, tpu.core_type = #tpu.core_type<tc>, window_params = [{transform_indices = @transform_0, window_bounds = array<i64: 16, 32>}, {transform_indices = @transform_1, window_bounds = array<i64: 16, 16>}]} {
    %c0 = arith.constant 0 : index
    %c0_0 = arith.constant 0 : index
    %0 = vector.load %arg1[%c0, %c0_0] : memref<16x32xf32, #tpu.memory_space<vmem>>, vector<16x16xf32>
    %c0_1 = arith.constant 0 : index
    %c0_2 = arith.constant 0 : index
    %1 = vector.load %arg2[%c0_1, %c0_2] : memref<16x16xf32, #tpu.memory_space<vmem>>, vector<16x16xf32>
    tpu.vector_store %arg2[%c0_1, %c0_2], %0 {strides = array<i32>} : memref<16x16xf32, #tpu.memory_space<vmem>>, vector<16x16xf32>,
    return
  }
  func.func @transform_0(%arg0: i32) -> (i32, i32) {
    %c0_i32 = arith.constant 0 : i32
    %c0_i32_0 = arith.constant 0 : i32
    return %arg0, %c0_i32 : i32, i32
  }
  func.func @transform_1(%arg0: i32) -> (i32, i32) {
    %c0_i32 = arith.constant 0 : i32
    %c0_i32_0 = arith.constant 0 : i32
    return %arg0, %c0_i32 : i32, i32
  }
}

</mosaic_0001>

<llo_original>
// kernel: tpu_custom_call.1
$region0: #{tpu_custom_call.1}
  #allocation0 [shape = 'u32[]', space=smem, size = 0x4, offset = 0x4, fixed_abs, tag = 'smem constant byte address 0x4 - core index']
  #allocation1 [shape = 'u32[144,128]{1,0:T(1,128)}', space=vmem, size = 0x12000, scoped, tag = 'internal scratch']
  %s0 = inlined_call_operand.hbm [shape: f32[16,32], index: 0, kind: input, shape index: {}]
  %s1 = inlined_call_operand.hbm [shape: f32[16,16], index: 1, kind: output, shape index: {}]
  %s2 = sld [smem:[#allocation0]]
  $region18: #{tpu_custom_call.1} parent=0
    _
  %s4 = ssub.s32 1, %s2
  %s5 = scalar_select 0, %s4, %s2
  $region1: #{tpu_custom_call.1} parent=0
    #allocation2 [shape = 'u8[8192]{0}', space=vmem, size = 0x2000, scoped, tag = 'input window, operand 0, single buffered']
    #allocation3 [shape = 's32[1]{0}', space=sflag, size = 0x4, scoped, tag = 'scoped memory for tpu_custom_call.1']
    #allocation4 [shape = 's32[1]{0}', space=sflag, size = 0x4, scoped, tag = 'scoped memory for tpu_custom_call.1']
    #allocation5 [shape = 'u8[8192]{0}', space=vmem, size = 0x2000, scoped, tag = 'output window, operand 0, single buffered']
    %6 = vsyncpa [#allocation3], 0
    %7 = vsyncpa [#allocation4], 0
    // Predicated region
    $region2: #{tpu_custom_call.1} parent=1 // pred_check
      _
    $region3: #{tpu_custom_call.1} parent=1 // pred_check_branch
      %9 = sbr.rel (0) target = $region5
    $region4: #{tpu_custom_call.1} parent=1 // pred_region
      %s11 = ssub.s32 256, 256
      %12 = vsyncadd [#allocation3], %s11
      %s13 = sshll.u32 [#allocation2], 4
      %s14 = int_to_ptr.vmem [resolvable:$true] %s13
      %19 = dma.hbm_to_vmem [thread:$0]  %s0, 256, %s14, [#allocation3], 128, 128, 8
    $region5: #{tpu_custom_call.1} parent=1 // pred_fallthru
      _
    // Predicated region
    $region6: #{tpu_custom_call.1} parent=1 // pred_check
      _
    $region7: #{tpu_custom_call.1} parent=1 // pred_check_branch
      %21 = sbr.rel (0) target = $region9
    $region8: #{tpu_custom_call.1} parent=1 // pred_region
      %22 = dma.done [#allocation3], 256
    $region9: #{tpu_custom_call.1} parent=1 // pred_fallthru
      _
    %v23 = vld [vmem:[#allocation2] sm:$0xff]
    %v24 = vld [vmem:[#allocation2 + $0x8] sm:$0xff]
    %vm25 = vcmask 130048
    %26 = vst.msk [vmem:[#allocation5] sm:$0xff] %vm25, %v23
    %27 = vst.msk [vmem:[#allocation5 + $0x8] sm:$0xff] %vm25, %v24
    // Predicated region
    $region10: #{tpu_custom_call.1} parent=1 // pred_check
      _
    $region11: #{tpu_custom_call.1} parent=1 // pred_check_branch
      %29 = sbr.rel (0) target = $region13
    $region12: #{tpu_custom_call.1} parent=1 // pred_region
      %s31 = ssub.s32 256, 256
      %32 = vsyncadd [#allocation4], %s31
      %s33 = sshll.u32 [#allocation5], 4
      %s34 = int_to_ptr.vmem [resolvable:$true] %s33
      %39 = dma.vmem_to_hbm [thread:$0]  %s34, 256, %s1, [#allocation4], 128, 128, 8
    $region13: #{tpu_custom_call.1} parent=1 // pred_fallthru
      _
    // Predicated region
    $region14: #{tpu_custom_call.1} parent=1 // pred_check
      _
    $region15: #{tpu_custom_call.1} parent=1 // pred_check_branch
      %41 = sbr.rel (0) target = $region17
    $region16: #{tpu_custom_call.1} parent=1 // pred_region
      %42 = dma.done [#allocation4], 256
    $region17: #{tpu_custom_call.1} parent=1 // pred_fallthru
      _
    %43 = vsyncpa [#allocation3], 1
    %44 = vsyncpa [#allocation4], 1

</llo_original>
